<compile_context>
chip_gen: v6e
topology: v6e:2x2x1
jax: 0.10.0
libtpu: 0.0.40
codegen_flags: <defaults>
</compile_context>

<pallas_src>
import jax
import jax.numpy as jnp
from jax.experimental import pallas as pl
from jax.experimental.pallas import tpu as pltpu


# ----------------------------------------------------------------------------
# Pallas kernels.
# ----------------------------------------------------------------------------
def _layer1_kernel(a_ref, r_ref, b1_ref, w2_ref, o_ref, acc_ref):
    """acc += A_tile @ XW1_tile; epilogue: relu(acc + b1) @ W2 -> bf16 store."""
    k = pl.program_id(1)

    @pl.when(k == 0)
    def _():
        acc_ref[...] = jnp.zeros_like(acc_ref)

    # bf16 operands, f32 accumulation on the MXU.
    acc_ref[...] += jnp.dot(
        a_ref[...], r_ref[...], preferred_element_type=jnp.float32
    )

    @pl.when(k == pl.num_programs(1) - 1)
    def _():
        h = jnp.maximum(acc_ref[...] + b1_ref[...], 0.0)        # f32, [tm, HIDp]
        # Fused layer-2 feature transform (once per row tile, f32 for accuracy).
        hw2 = jnp.dot(h, w2_ref[...], preferred_element_type=jnp.float32)
        o_ref[...] = hw2.astype(o_ref.dtype)                    # bf16, lane-dense


def _layer2_kernel(a_ref, r_ref, b2_ref, o_ref, acc_ref):
    """acc += A_tile @ HW2_tile; epilogue: acc + b2 -> f32 store."""
    k = pl.program_id(1)

    @pl.when(k == 0)
    def _():
        acc_ref[...] = jnp.zeros_like(acc_ref)

    acc_ref[...] += jnp.dot(
        a_ref[...], r_ref[...], preferred_element_type=jnp.float32
    )

    @pl.when(k == pl.num_programs(1) - 1)
    def _():
        o_ref[...] = (acc_ref[...] + b2_ref[...]).astype(o_ref.dtype)


# ----------------------------------------------------------------------------
# pallas_call wrappers.
# ----------------------------------------------------------------------------
_COMPILER_PARAMS = pltpu.CompilerParams(
    dimension_semantics=("parallel", "arbitrary"),
    vmem_limit_bytes=32 * 1024 * 1024,       # safe on v5e/v6e (128 MiB) & v7x (64 MiB)
)


def _pick_tile(n_pad, candidates):
    for c in candidates:
        if n_pad % c == 0:
            return c
    return n_pad


def _layer1_call(a_bf16, xw1_bf16, b1_f32, w2_f32):
    n_pad = a_bf16.shape[0]
    hid_pad = xw1_bf16.shape[1]
    out_pad = w2_f32.shape[1]
    tm = _pick_tile(n_pad, (256, 128))            # output row tile
    tk = _pick_tile(n_pad, (512, 256, 128))       # reduction (A column) tile

    return pl.pallas_call(
        _layer1_kernel,
        out_shape=jax.ShapeDtypeStruct((n_pad, out_pad), jnp.bfloat16),
        grid_spec=pltpu.PrefetchScalarGridSpec(
            num_scalar_prefetch=0,
            grid=(n_pad // tm, n_pad // tk),
            in_specs=[
                pl.BlockSpec((tm, tk), lambda i, k: (i, k)),        # A_hat tile (bf16)
                pl.BlockSpec((tk, hid_pad), lambda i, k: (k, 0)),   # XW1 tile  (bf16)
                pl.BlockSpec((1, hid_pad), lambda i, k: (0, 0)),    # b1 (grid-invariant)
                pl.BlockSpec((hid_pad, out_pad), lambda i, k: (0, 0)),  # W2 resident
            ],
            out_specs=pl.BlockSpec((tm, out_pad), lambda i, k: (i, 0)),
            scratch_shapes=[pltpu.VMEM((tm, hid_pad), jnp.float32)],
        ),
        compiler_params=_COMPILER_PARAMS,
    )(a_bf16, xw1_bf16, b1_f32, w2_f32)


def _layer2_call(a_bf16, hw2_bf16, b2_f32):
    n_pad = a_bf16.shape[0]
    out_pad = hw2_bf16.shape[1]
    tm = _pick_tile(n_pad, (256, 128))
    tk = _pick_tile(n_pad, (512, 256, 128))

    return pl.pallas_call(
        _layer2_kernel,
        out_shape=jax.ShapeDtypeStruct((n_pad, out_pad), jnp.float32),
        grid_spec=pltpu.PrefetchScalarGridSpec(
            num_scalar_prefetch=0,
            grid=(n_pad // tm, n_pad // tk),
            in_specs=[
                pl.BlockSpec((tm, tk), lambda i, k: (i, k)),        # A_hat tile (bf16)
                pl.BlockSpec((tk, out_pad), lambda i, k: (k, 0)),   # HW2 tile  (bf16)
                pl.BlockSpec((1, out_pad), lambda i, k: (0, 0)),    # b2 (grid-invariant)
            ],
            out_specs=pl.BlockSpec((tm, out_pad), lambda i, k: (i, 0)),
            scratch_shapes=[pltpu.VMEM((tm, out_pad), jnp.float32)],
        ),
        compiler_params=_COMPILER_PARAMS,
    )(a_bf16, hw2_bf16, b2_f32)


# ----------------------------------------------------------------------------
# Glue: dense symmetrically-normalized adjacency from edge_index.
# ----------------------------------------------------------------------------
def build_a_hat(edge_index, num_nodes):
    src, tgt = edge_index[0], edge_index[1]
    a = jnp.zeros((num_nodes, num_nodes), jnp.float32)
    a = a.at[tgt, src].add(1.0)                  # A[target, source] = 1
    a = a + jnp.eye(num_nodes, dtype=jnp.float32)
    deg = jnp.sum(a, axis=1)
    dinv = jnp.where(deg > 0, jax.lax.rsqrt(deg), 0.0)
    return dinv[:, None] * a * dinv[None, :]


def _round_up(x, m):
    return ((x + m - 1) // m) * m


def _pad_to(x, rows, cols):
    return jnp.pad(x, ((0, rows - x.shape[0]), (0, cols - x.shape[1])))


# ----------------------------------------------------------------------------
# Full GCNEncoder forward (wrapper around the two Pallas aggregation passes).
# ----------------------------------------------------------------------------
def gcn_encoder_forward(x, edge_index, w1, b1, w2, b2):
    n = x.shape[0]
    hid = w1.shape[1]
    out_ch = w2.shape[1]

    n_pad = _round_up(max(n, 8), 128)
    hid_pad = _round_up(hid, 128)
    out_pad = _round_up(out_ch, 128)

    a_hat = build_a_hat(edge_index, n)
    a_pad = _pad_to(a_hat, n_pad, n_pad).astype(jnp.bfloat16)

    # Tiny layer-1 feature transform hoisted to XLA (contraction depth = in_ch).
    xw1 = x @ w1                                                  # [N, HID] f32
    xw1_p = _pad_to(xw1, n_pad, hid_pad).astype(jnp.bfloat16)
    b1_p = _pad_to(b1.reshape(1, -1), 1, hid_pad).astype(jnp.float32)
    w2_p = _pad_to(w2, hid_pad, out_pad).astype(jnp.float32)
    b2_p = _pad_to(b2.reshape(1, -1), 1, out_pad).astype(jnp.float32)

    # Layer 1 (+ fused layer-2 transform): hw2 = relu(A_hat @ XW1 + b1) @ W2.
    hw2_p = _layer1_call(a_pad, xw1_p, b1_p, w2_p)                # [Np, OUTp] bf16

    # Layer 2: out = A_hat @ hw2 + b2 (second pipelined pass over A_hat).
    out_p = _layer2_call(a_pad, hw2_p, b2_p)                      # [Np, OUTp] f32

    return out_p[:n, :out_ch]


# ----------------------------------------------------------------------------
# Pure-JAX f32 reference (for a correctness check).
# ----------------------------------------------------------------------------
def gcn_encoder_ref(x, edge_index, w1, b1, w2, b2):
    a_hat = build_a_hat(edge_index, x.shape[0])
    h = jnp.maximum(a_hat @ (x @ w1) + b1, 0.0)
    return a_hat @ (h @ w2) + b2


if __name__ == "__main__":
    # Small deterministic problem: 32 nodes, in_channels=8, out_channels=16.
    N = 32
    IN_CH = 8
    OUT_CH = 16
    HID = 2 * OUT_CH

    key = jax.random.PRNGKey(0)
    kx, kw1, kw2 = jax.random.split(key, 3)

    # Node features [N, IN_CH].
    x = jax.random.normal(kx, (N, IN_CH), dtype=jnp.float32)

    # Deterministic ring graph, made undirected: edge_index [2, 2N].
    srcs = jnp.arange(N, dtype=jnp.int32)
    nxt = (srcs + 1) % N
    edge_index = jnp.stack(
        [jnp.concatenate([srcs, nxt]), jnp.concatenate([nxt, srcs])], axis=0
    )

    # GCNConv-shaped parameters (glorot-like weights, zero biases).
    def glorot(k, shape):
        limit = (6.0 / (shape[0] + shape[1])) ** 0.5
        return jax.random.uniform(k, shape, jnp.float32, -limit, limit)

    w1 = glorot(kw1, (IN_CH, HID))
    b1 = jnp.zeros((1, HID), jnp.float32)
    w2 = glorot(kw2, (HID, OUT_CH))
    b2 = jnp.zeros((1, OUT_CH), jnp.float32)

    out = gcn_encoder_forward(x, edge_index, w1, b1, w2, b2)
    out = jax.block_until_ready(out)

    ref = gcn_encoder_ref(x, edge_index, w1, b1, w2, b2)
    assert out.shape == (N, OUT_CH)
    # bf16 A_hat / aggregation operands -> loosened tolerance vs the f32 ref.
    assert jnp.allclose(out, ref, atol=2e-2, rtol=2e-2), float(
        jnp.max(jnp.abs(out - ref))
    )

    print("KERNEL_OK")
</pallas_src>

<mosaic_0001>
module attributes {stable_mosaic.version = 11 : i64} {
  func.func @_layer1_kernel(%arg0: i32, %arg1: i32, %arg2: memref<128x128xbf16, #tpu.memory_space<vmem>>, %arg3: memref<128x128xbf16, #tpu.memory_space<vmem>>, %arg4: memref<1x128xf32, #tpu.memory_space<vmem>>, %arg5: memref<128x128xf32, #tpu.memory_space<vmem>>, %arg6: memref<128x128xbf16, #tpu.memory_space<vmem>>, %arg7: memref<128x128xf32, #tpu.memory_space<vmem>>) attributes {dimension_semantics = [#tpu.dimension_semantics<parallel>, #tpu.dimension_semantics<arbitrary>], iteration_bounds = array<i64: 1, 1>, scalar_prefetch = 0 : i64, scratch_operands = 1 : i64, tpu.core_type = #tpu.core_type<tc>, window_params = [{transform_indices = @transform_0, window_bounds = array<i64: 128, 128>}, {transform_indices = @transform_1, window_bounds = array<i64: 128, 128>}, {pipeline_mode = #tpu.pipeline_mode<synchronous>, transform_indices = @transform_2, window_bounds = array<i64: 1, 128>}, {pipeline_mode = #tpu.pipeline_mode<synchronous>, transform_indices = @transform_3, window_bounds = array<i64: 128, 128>}, {transform_indices = @transform_4, window_bounds = array<i64: 128, 128>}]} {
    %c0_i32 = arith.constant 0 : i32
    %0 = arith.cmpi eq, %arg1, %c0_i32 : i32
    %1 = arith.extui %0 : i1 to i32
    %c0_i32_0 = arith.constant 0 : i32
    %2 = arith.cmpi ne, %1, %c0_i32_0 : i32
    scf.if %2 {
      %cst_10 = arith.constant 0.000000e+00 : f32
      %12 = vector.broadcast %cst_10 : f32 to vector<128x128xf32>
      %c0_11 = arith.constant 0 : index
      %c0_12 = arith.constant 0 : index
      %13 = vector.load %arg7[%c0_11, %c0_12] : memref<128x128xf32, #tpu.memory_space<vmem>>, vector<128x128xf32>
      tpu.vector_store %arg7[%c0_11, %c0_12], %12 {strides = array<i32>} : memref<128x128xf32, #tpu.memory_space<vmem>>, vector<128x128xf32>,
    } else {
    }
    %c0 = arith.constant 0 : index
    %c0_1 = arith.constant 0 : index
    %3 = vector.load %arg7[%c0, %c0_1] : memref<128x128xf32, #tpu.memory_space<vmem>>, vector<128x128xf32>
    %c0_2 = arith.constant 0 : index
    %c0_3 = arith.constant 0 : index
    %4 = vector.load %arg2[%c0_2, %c0_3] : memref<128x128xbf16, #tpu.memory_space<vmem>>, vector<128x128xbf16>
    %c0_4 = arith.constant 0 : index
    %c0_5 = arith.constant 0 : index
    %5 = vector.load %arg3[%c0_4, %c0_5] : memref<128x128xbf16, #tpu.memory_space<vmem>>, vector<128x128xbf16>
    %cst = arith.constant dense<0.000000e+00> : vector<128x128xf32>
    %6 = tpu.matmul %4, %5, %cst {dimension_numbers = #tpu.dot_dimension_numbers<[1], [0], [0], [1], [0, 0, 1, 1], [], []>} : vector<128x128xbf16>, vector<128x128xbf16>, vector<128x128xf32> -> vector<128x128xf32>
    %7 = arith.addf %3, %6 : vector<128x128xf32>
    %c0_6 = arith.constant 0 : index
    %c0_7 = arith.constant 0 : index
    %8 = vector.load %arg7[%c0_6, %c0_7] : memref<128x128xf32, #tpu.memory_space<vmem>>, vector<128x128xf32>
    tpu.vector_store %arg7[%c0_6, %c0_7], %7 {strides = array<i32>} : memref<128x128xf32, #tpu.memory_space<vmem>>, vector<128x128xf32>,
    %c0_i32_8 = arith.constant 0 : i32
    %9 = arith.cmpi eq, %arg1, %c0_i32_8 : i32
    %10 = arith.extui %9 : i1 to i32
    %c0_i32_9 = arith.constant 0 : i32
    %11 = arith.cmpi ne, %10, %c0_i32_9 : i32
    scf.if %11 {
      %c0_10 = arith.constant 0 : index
      %c0_11 = arith.constant 0 : index
      %12 = vector.load %arg7[%c0_10, %c0_11] : memref<128x128xf32, #tpu.memory_space<vmem>>, vector<128x128xf32>
      %c0_12 = arith.constant 0 : index
      %c0_13 = arith.constant 0 : index
      %13 = vector.load %arg4[%c0_12, %c0_13] : memref<1x128xf32, #tpu.memory_space<vmem>>, vector<1x128xf32>
      %14 = vector.broadcast %13 : vector<1x128xf32> to vector<128x128xf32>
      %15 = arith.addf %12, %14 : vector<128x128xf32>
      %cst_14 = arith.constant 0.000000e+00 : f32
      %16 = vector.broadcast %cst_14 : f32 to vector<128x128xf32>
      %17 = arith.maximumf %15, %16 : vector<128x128xf32>
      %c0_15 = arith.constant 0 : index
      %c0_16 = arith.constant 0 : index
      %18 = vector.load %arg5[%c0_15, %c0_16] : memref<128x128xf32, #tpu.memory_space<vmem>>, vector<128x128xf32>
      %cst_17 = arith.constant dense<0.000000e+00> : vector<128x128xf32>
      %19 = tpu.matmul %17, %18, %cst_17 {dimension_numbers = #tpu.dot_dimension_numbers<[1], [0], [0], [1], [0, 0, 1, 1], [], []>} : vector<128x128xf32>, vector<128x128xf32>, vector<128x128xf32> -> vector<128x128xf32>
      %20 = arith.truncf %19 : vector<128x128xf32> to vector<128x128xbf16>
      %c0_18 = arith.constant 0 : index
      %c0_19 = arith.constant 0 : index
      %21 = vector.load %arg6[%c0_18, %c0_19] : memref<128x128xbf16, #tpu.memory_space<vmem>>, vector<128x128xbf16>
      tpu.vector_store %arg6[%c0_18, %c0_19], %20 {strides = array<i32>} : memref<128x128xbf16, #tpu.memory_space<vmem>>, vector<128x128xbf16>,
    } else {
    }
    return
  }
  func.func @transform_0(%arg0: i32, %arg1: i32) -> (i32, i32) {
    %c0_i32 = arith.constant 0 : i32
    return %arg0, %arg1 : i32, i32
  }
  func.func @transform_1(%arg0: i32, %arg1: i32) -> (i32, i32) {
    %c0_i32 = arith.constant 0 : i32
    %c0_i32_0 = arith.constant 0 : i32
    return %arg1, %c0_i32 : i32, i32
  }
  func.func @transform_2(%arg0: i32, %arg1: i32) -> (i32, i32) {
    %c0_i32 = arith.constant 0 : i32
    %c0_i32_0 = arith.constant 0 : i32
    %c0_i32_1 = arith.constant 0 : i32
    return %c0_i32, %c0_i32_0 : i32, i32
  }
  func.func @transform_3(%arg0: i32, %arg1: i32) -> (i32, i32) {
    %c0_i32 = arith.constant 0 : i32
    %c0_i32_0 = arith.constant 0 : i32
    %c0_i32_1 = arith.constant 0 : i32
    return %c0_i32, %c0_i32_0 : i32, i32
  }
  func.func @transform_4(%arg0: i32, %arg1: i32) -> (i32, i32) {
    %c0_i32 = arith.constant 0 : i32
    %c0_i32_0 = arith.constant 0 : i32
    return %arg0, %c0_i32 : i32, i32
  }
}

</mosaic_0001>

<llo_original>
// kernel: tpu_custom_call.1
$region0: #{tpu_custom_call.1}
  #allocation0 [shape = 'u32[]', space=smem, size = 0x4, offset = 0x4, fixed_abs, tag = 'smem constant byte address 0x4 - core index']
  #allocation1 [shape = 'u32[144,128]{1,0:T(1,128)}', space=vmem, size = 0x12000, scoped, tag = 'internal scratch']
  #allocation2 [shape = 'f32[128,128]{1,0:T(8,128)}', space=vmem, size = 0x10000, scoped, tag = 'scratch operand']
  %s0 = inlined_call_operand.hbm [shape: bf16[128,128], index: 0, kind: input, shape index: {}]
  %s1 = inlined_call_operand.hbm [shape: bf16[128,128], index: 1, kind: input, shape index: {}]
  %s2 = inlined_call_operand.vmem [shape: f32[1,128], index: 2, kind: input, shape index: {}]
  %s3 = inlined_call_operand.hbm [shape: f32[128,128], index: 3, kind: input, shape index: {}]
  %s4 = inlined_call_operand.hbm [shape: bf16[128,128], index: 4, kind: output, shape index: {}]
  %s5 = sld [smem:[#allocation0]]
  $region46: #{tpu_custom_call.1} parent=0
    _
  %s7 = ssub.s32 1, %s5
  %s8 = scalar_select 0, %s7, %s5
  $region1: #{tpu_custom_call.1} parent=0
    #allocation3 [shape = 'u8[32768]{0}', space=vmem, size = 0x8000, scoped, tag = 'input window, operand 0, single buffered']
    #allocation4 [shape = 's32[1]{0}', space=sflag, size = 0x4, scoped, tag = 'scoped memory for tpu_custom_call.1']
    #allocation5 [shape = 's32[1]{0}', space=sflag, size = 0x4, scoped, tag = 'scoped memory for tpu_custom_call.1']
    #allocation6 [shape = 'u8[32768]{0}', space=vmem, size = 0x8000, scoped, tag = 'input window, operand 1, single buffered']
    #allocation7 [shape = 's32[1]{0}', space=sflag, size = 0x4, scoped, tag = 'scoped memory for tpu_custom_call.1']
    #allocation8 [shape = 'u8[65536]{0}', space=vmem, size = 0x10000, scoped, tag = 'input window, operand 3, single buffered']
    #allocation9 [shape = 'u8[32768]{0}', space=vmem, size = 0x8000, scoped, tag = 'output window, operand 0, single buffered']
    %9 = vsyncpa [#allocation4], 0
    %10 = vsyncpa [#allocation7], 0
    %11 = vsyncpa [#allocation5], 0
    // Predicated region
    $region2: #{tpu_custom_call.1} parent=1 // pred_check
      _
    $region3: #{tpu_custom_call.1} parent=1 // pred_check_branch
      %13 = sbr.rel (0) target = $region5
    $region4: #{tpu_custom_call.1} parent=1 // pred_region
      %s15 = ssub.s32 1024, 1024
      %16 = vsyncadd [#allocation4], %s15
      %s17 = sshll.u32 [#allocation3], 4
      %s18 = int_to_ptr.vmem [resolvable:$true] %s17
      %23 = dma.hbm_to_vmem [thread:$0]  %s0, 1024, %s18, [#allocation4], 64, 64, 4
    $region5: #{tpu_custom_call.1} parent=1 // pred_fallthru
      _
    // Predicated region
    $region6: #{tpu_custom_call.1} parent=1 // pred_check
      _
    $region7: #{tpu_custom_call.1} parent=1 // pred_check_branch
      %25 = sbr.rel (0) target = $region9
    $region8: #{tpu_custom_call.1} parent=1 // pred_region
      %s27 = ssub.s32 1024, 1024
      %28 = vsyncadd [#allocation7], %s27
      %s29 = sshll.u32 [#allocation6], 4
      %s30 = int_to_ptr.vmem [resolvable:$true] %s29
      %35 = dma.hbm_to_vmem [thread:$0]  %s1, 1024, %s30, [#allocation7], 64, 64, 4
    $region9: #{tpu_custom_call.1} parent=1 // pred_fallthru
      _
    // Predicated region
    $region10: #{tpu_custom_call.1} parent=1 // pred_check
      _
    $region11: #{tpu_custom_call.1} parent=1 // pred_check_branch
      %37 = sbr.rel (0) target = $region13
    $region12: #{tpu_custom_call.1} parent=1 // pred_region
      _
    $region13: #{tpu_custom_call.1} parent=1 // pred_fallthru
      _
    // Predicated region
    $region14: #{tpu_custom_call.1} parent=1 // pred_check
      _
    $region15: #{tpu_custom_call.1} parent=1 // pred_check_branch
      %39 = sbr.rel (0) target = $region17
    $region16: #{tpu_custom_call.1} parent=1 // pred_region
      %s41 = ssub.s32 2048, 2048
      %42 = vsyncadd [#allocation7], %s41
      %s43 = sshll.u32 [#allocation8], 4
      %s44 = int_to_ptr.vmem [resolvable:$true] %s43
      %49 = dma.hbm_to_vmem [thread:$0]  %s3, 2048, %s44, [#allocation7], 128, 128, 8
    $region17: #{tpu_custom_call.1} parent=1 // pred_fallthru
      _
    // Predicated region
    $region18: #{tpu_custom_call.1} parent=1 // pred_check
      _
    $region19: #{tpu_custom_call.1} parent=1 // pred_check_branch
      %51 = sbr.rel (0) target = $region21
    $region20: #{tpu_custom_call.1} parent=1 // pred_region
      %52 = dma.done [#allocation4], 1024
    $region21: #{tpu_custom_call.1} parent=1 // pred_fallthru
      _
    // Predicated region
    $region22: #{tpu_custom_call.1} parent=1 // pred_check
      _
    $region23: #{tpu_custom_call.1} parent=1 // pred_check_branch
      %54 = sbr.rel (0) target = $region25
    $region24: #{tpu_custom_call.1} parent=1 // pred_region
      %55 = dma.done [#allocation7], 1024
    $region25: #{tpu_custom_call.1} parent=1 // pred_fallthru
      _
    // Predicated region
    $region26: #{tpu_custom_call.1} parent=1 // pred_check
      _
    $region27: #{tpu_custom_call.1} parent=1 // pred_check_branch
      %57 = sbr.rel (0) target = $region29
    $region28: #{tpu_custom_call.1} parent=1 // pred_region
      %58 = dma.done [#allocation7], 2048
    $region29: #{tpu_custom_call.1} parent=1 // pred_fallthru
      _
    %p60 = scmp.eq.s32.totalorder 0, 0
    // Predicated region
    $region30: #{tpu_custom_call.1} parent=1 // pred_check
      %p61 = pneg %p60
    $region31: #{tpu_custom_call.1} parent=1 // pred_check_branch
      %63 = sbr.rel (%p61) target = $region33
    $region32: #{tpu_custom_call.1} parent=1 // pred_region
      %64 = vst [vmem:[#allocation2] sm:$0xff] 0.0
      %65 = vst [vmem:[#allocation2 + $0x8] sm:$0xff] 0.0
      %66 = vst [vmem:[#allocation2 + $0x10] sm:$0xff] 0.0
      %67 = vst [vmem:[#allocation2 + $0x18] sm:$0xff] 0.0
      %68 = vst [vmem:[#allocation2 + $0x20] sm:$0xff] 0.0
      %69 = vst [vmem:[#allocation2 + $0x28] sm:$0xff] 0.0
      %70 = vst [vmem:[#allocation2 + $0x30] sm:$0xff] 0.0
      %71 = vst [vmem:[#allocation2 + $0x38] sm:$0xff] 0.0
      %72 = vst [vmem:[#allocation2 + $0x40] sm:$0xff] 0.0
      %73 = vst [vmem:[#allocation2 + $0x48] sm:$0xff] 0.0
      %74 = vst [vmem:[#allocation2 + $0x50] sm:$0xff] 0.0
      %75 = vst [vmem:[#allocation2 + $0x58] sm:$0xff] 0.0
      %76 = vst [vmem:[#allocation2 + $0x60] sm:$0xff] 0.0
      %77 = vst [vmem:[#allocation2 + $0x68] sm:$0xff] 0.0
      %78 = vst [vmem:[#allocation2 + $0x70] sm:$0xff] 0.0
      %79 = vst [vmem:[#allocation2 + $0x78] sm:$0xff] 0.0
    $region33: #{tpu_custom_call.1} parent=1 // pred_fallthru
      _
    %v80 = vld [vmem:[#allocation2] sm:$0xff]
    %v81 = vld [vmem:[#allocation2 + $0x8] sm:$0xff]
    %v82 = vld [vmem:[#allocation2 + $0x10] sm:$0xff]
    %v83 = vld [vmem:[#allocation2 + $0x18] sm:$0xff]
    %v84 = vld [vmem:[#allocation2 + $0x20] sm:$0xff]
    %v85 = vld [vmem:[#allocation2 + $0x28] sm:$0xff]
    %v86 = vld [vmem:[#allocation2 + $0x30] sm:$0xff]
    %v87 = vld [vmem:[#allocation2 + $0x38] sm:$0xff]
    %v88 = vld [vmem:[#allocation2 + $0x40] sm:$0xff]
    %v89 = vld [vmem:[#allocation2 + $0x48] sm:$0xff]
    %v90 = vld [vmem:[#allocation2 + $0x50] sm:$0xff]
    %v91 = vld [vmem:[#allocation2 + $0x58] sm:$0xff]
    %v92 = vld [vmem:[#allocation2 + $0x60] sm:$0xff]
    %v93 = vld [vmem:[#allocation2 + $0x68] sm:$0xff]
    %v94 = vld [vmem:[#allocation2 + $0x70] sm:$0xff]
    %v95 = vld [vmem:[#allocation2 + $0x78] sm:$0xff]
    %v96 = vld [vmem:[#allocation3] sm:$0xf]
    %v97 = vld [vmem:[#allocation3 + $0x4] sm:$0xf]
    %v98 = vld [vmem:[#allocation3 + $0x8] sm:$0xf]
    %v99 = vld [vmem:[#allocation3 + $0xc] sm:$0xf]
    %v100 = vld [vmem:[#allocation3 + $0x10] sm:$0xf]
    %v101 = vld [vmem:[#allocation3 + $0x14] sm:$0xf]
    %v102 = vld [vmem:[#allocation3 + $0x18] sm:$0xf]
    %v103 = vld [vmem:[#allocation3 + $0x1c] sm:$0xf]
    %v104 = vld [vmem:[#allocation3 + $0x20] sm:$0xf]
    %v105 = vld [vmem:[#allocation3 + $0x24] sm:$0xf]
    %v106 = vld [vmem:[#allocation3 + $0x28] sm:$0xf]
    %v107 = vld [vmem:[#allocation3 + $0x2c] sm:$0xf]
    %v108 = vld [vmem:[#allocation3 + $0x30] sm:$0xf]
    %v109 = vld [vmem:[#allocation3 + $0x34] sm:$0xf]
    %v110 = vld [vmem:[#allocation3 + $0x38] sm:$0xf]
    %v111 = vld [vmem:[#allocation3 + $0x3c] sm:$0xf]
    %v112 = vld [vmem:[#allocation6] sm:$0xf]
    %v113 = vld [vmem:[#allocation6 + $0x4] sm:$0xf]
    %v114 = vld [vmem:[#allocation6 + $0x8] sm:$0xf]
    %v115 = vld [vmem:[#allocation6 + $0xc] sm:$0xf]
    %v116 = vld [vmem:[#allocation6 + $0x10] sm:$0xf]
    %v117 = vld [vmem:[#allocation6 + $0x14] sm:$0xf]
    %v118 = vld [vmem:[#allocation6 + $0x18] sm:$0xf]
    %v119 = vld [vmem:[#allocation6 + $0x1c] sm:$0xf]
    %v120 = vld [vmem:[#allocation6 + $0x20] sm:$0xf]
    %v121 = vld [vmem:[#allocation6 + $0x24] sm:$0xf]
    %v122 = vld [vmem:[#allocation6 + $0x28] sm:$0xf]
    %v123 = vld [vmem:[#allocation6 + $0x2c] sm:$0xf]
    %v124 = vld [vmem:[#allocation6 + $0x30] sm:$0xf]
    %v125 = vld [vmem:[#allocation6 + $0x34] sm:$0xf]
    %v126 = vld [vmem:[#allocation6 + $0x38] sm:$0xf]
    %v127 = vld [vmem:[#allocation6 + $0x3c] sm:$0xf]
    %v144 = vunpack.c.l.b16 %v96
    %v145 = vunpack.c.l.b16 %v97
    %v146 = vunpack.c.l.b16 %v98
    %v147 = vunpack.c.l.b16 %v99
    %v148 = vunpack.c.l.b16 %v100
    %v149 = vunpack.c.l.b16 %v101
    %v150 = vunpack.c.l.b16 %v102
    %v151 = vunpack.c.l.b16 %v103
    %v152 = vunpack.c.l.b16 %v104
    %v153 = vunpack.c.l.b16 %v105
    %v154 = vunpack.c.l.b16 %v106
    %v155 = vunpack.c.l.b16 %v107
    %v156 = vunpack.c.l.b16 %v108
    %v157 = vunpack.c.l.b16 %v109
    %v158 = vunpack.c.l.b16 %v110
    %v159 = vunpack.c.l.b16 %v111
    %v160 = vpack.c.b16 %v145, %v144
    %v161 = vpack.c.b16 %v147, %v146
    %v162 = vpack.c.b16 %v149, %v148
    %v163 = vpack.c.b16 %v151, %v150
    %v164 = vpack.c.b16 %v153, %v152
    %v165 = vpack.c.b16 %v155, %v154
    %v166 = vpack.c.b16 %v157, %v156
    %v167 = vpack.c.b16 %v159, %v158
    %v192 = vunpack.c.l.b16 %v112
    %v193 = vunpack.c.l.b16 %v113
    %v194 = vunpack.c.l.b16 %v114
    %v195 = vunpack.c.l.b16 %v115
    %v196 = vunpack.c.l.b16 %v116
    %v197 = vunpack.c.l.b16 %v117
    %v198 = vunpack.c.l.b16 %v118
    %v199 = vunpack.c.l.b16 %v119
    %v200 = vunpack.c.l.b16 %v120
    %v201 = vunpack.c.l.b16 %v121
    %v202 = vunpack.c.l.b16 %v122
    %v203 = vunpack.c.l.b16 %v123
    %v204 = vunpack.c.l.b16 %v124
    %v205 = vunpack.c.l.b16 %v125
    %v206 = vunpack.c.l.b16 %v126
    %v207 = vunpack.c.l.b16 %v127
    %v208 = vpack.c.b16 %v193, %v192
    %v209 = vpack.c.b16 %v195, %v194
    %v210 = vpack.c.b16 %v197, %v196
    %v211 = vpack.c.b16 %v199, %v198
    %v212 = vpack.c.b16 %v201, %v200
    %v213 = vpack.c.b16 %v203, %v202
    %v214 = vpack.c.b16 %v205, %v204
    %v215 = vpack.c.b16 %v207, %v206
    %224 = vmatprep.subr.bf16.mxu0 0
    %225 = vmatpush1.bf16.msra.mxu0 %v215
    %226 = vmatprep.subr.bf16.mxu0 0
    %227 = vmatpush1.bf16.msra.mxu0 %v214
    %228 = vmatprep.subr.bf16.mxu0 0
    %229 = vmatpush1.bf16.msra.mxu0 %v213
    %230 = vmatprep.subr.bf16.mxu0 0
    %231 = vmatpush1.bf16.msra.mxu0 %v212
    %232 = vmatprep.subr.bf16.mxu0 0
    %233 = vmatpush1.bf16.msra.mxu0 %v211
    %234 = vmatprep.subr.bf16.mxu0 0
    %235 = vmatpush1.bf16.msra.mxu0 %v210
    %236 = vmatprep.subr.bf16.mxu0 0
    %237 = vmatpush1.bf16.msra.mxu0 %v209
    %238 = vmatprep.subr.bf16.mxu0 0
    %239 = vmatpush1.bf16.msra.mxu0 %v208
    %240 = vmatprep.subr.bf16.mxu0 0
    %241 = vmatpush2.bf16.msra.mxu0 0
    %242 = vmatprep.subr.bf16.mxu0 0
    %243 = vmatpush2.bf16.msra.mxu0 0
    %244 = vmatprep.subr.bf16.mxu0 0
    %245 = vmatpush2.bf16.msra.mxu0 0
    %246 = vmatprep.subr.bf16.mxu0 0
    %247 = vmatpush2.bf16.msra.mxu0 0
    %248 = vmatprep.subr.bf16.mxu0 0
    %249 = vmatpush2.bf16.msra.mxu0 0
    %250 = vmatprep.subr.bf16.mxu0 0
    %251 = vmatpush2.bf16.msra.mxu0 0
    %252 = vmatprep.subr.bf16.mxu0 0
    %253 = vmatpush2.bf16.msra.mxu0 0
    %254 = vmatprep.subr.bf16.mxu0 0
    %255 = vmatpush2.bf16.msra.mxu0 0
    %256 = vmatprep.mubr.bf16.mxu0 0
    %257 = vmatmul.mubr.bf16.gmra.mxu0 %v160
    %v258 = vpop.f32.mrf.mxu0
    %v259 = vadd.f32 0.0, %v258
    %v260 = vpop.f32.mrf.mxu0
    %v261 = vpop.f32.mrf.mxu0
    %v262 = vadd.f32 0.0, %v261
    %v263 = vpop.f32.mrf.mxu0
    %264 = vmatprep.mubr.bf16.mxu0 0
    %265 = vmatmul.mubr.bf16.gmra.mxu0 %v161
    %v266 = vpop.f32.mrf.mxu0
    %v267 = vadd.f32 0.0, %v266
    %v268 = vpop.f32.mrf.mxu0
    %v269 = vpop.f32.mrf.mxu0
    %v270 = vadd.f32 0.0, %v269
    %v271 = vpop.f32.mrf.mxu0
    %272 = vmatprep.mubr.bf16.mxu0 0
    %273 = vmatmul.mubr.bf16.gmra.mxu0 %v162
    %v274 = vpop.f32.mrf.mxu0
    %v275 = vadd.f32 0.0, %v274
    %v276 = vpop.f32.mrf.mxu0
    %v277 = vpop.f32.mrf.mxu0
    %v278 = vadd.f32 0.0, %v277
    %v279 = vpop.f32.mrf.mxu0
    %280 = vmatprep.mubr.bf16.mxu0 0
    %281 = vmatmul.mubr.bf16.gmra.mxu0 %v163
    %v282 = vpop.f32.mrf.mxu0
    %v283 = vadd.f32 0.0, %v282
    %v284 = vpop.f32.mrf.mxu0
    %v285 = vpop.f32.mrf.mxu0
    %v286 = vadd.f32 0.0, %v285
    %v287 = vpop.f32.mrf.mxu0
    %288 = vmatprep.mubr.bf16.mxu0 0
    %289 = vmatmul.mubr.bf16.gmra.mxu0 %v164
    %v290 = vpop.f32.mrf.mxu0
    %v291 = vadd.f32 0.0, %v290
    %v292 = vpop.f32.mrf.mxu0
    %v293 = vpop.f32.mrf.mxu0
    %v294 = vadd.f32 0.0, %v293
    %v295 = vpop.f32.mrf.mxu0
    %296 = vmatprep.mubr.bf16.mxu0 0
    %297 = vmatmul.mubr.bf16.gmra.mxu0 %v165
    %v298 = vpop.f32.mrf.mxu0
    %v299 = vadd.f32 0.0, %v298
    %v300 = vpop.f32.mrf.mxu0
    %v301 = vpop.f32.mrf.mxu0
    %v302 = vadd.f32 0.0, %v301
    %v303 = vpop.f32.mrf.mxu0
    %304 = vmatprep.mubr.bf16.mxu0 0
    %305 = vmatmul.mubr.bf16.gmra.mxu0 %v166
    %v306 = vpop.f32.mrf.mxu0
    %v307 = vadd.f32 0.0, %v306
    %v308 = vpop.f32.mrf.mxu0
    %v309 = vpop.f32.mrf.mxu0
    %v310 = vadd.f32 0.0, %v309
    %v311 = vpop.f32.mrf.mxu0
    %312 = vmatprep.mubr.bf16.mxu0 0
    %313 = vmatmul.mubr.bf16.gmra.mxu0 %v167
    %v314 = vpop.f32.mrf.mxu0
    %v315 = vadd.f32 0.0, %v314
    %v316 = vpop.f32.mrf.mxu0
    %v317 = vpop.f32.mrf.mxu0
    %v318 = vadd.f32 0.0, %v317
    %v319 = vpop.f32.mrf.mxu0
    %320 = vdwg.mxu0
    %v321 = vadd.f32 %v80, %v259
    %v322 = vadd.f32 %v81, %v262
    %v323 = vadd.f32 %v82, %v267
    %v324 = vadd.f32 %v83, %v270
    %v325 = vadd.f32 %v84, %v275
    %v326 = vadd.f32 %v85, %v278
    %v327 = vadd.f32 %v86, %v283
    %v328 = vadd.f32 %v87, %v286
    %v329 = vadd.f32 %v88, %v291
    %v330 = vadd.f32 %v89, %v294
    %v331 = vadd.f32 %v90, %v299
    %v332 = vadd.f32 %v91, %v302
    %v333 = vadd.f32 %v92, %v307
    %v334 = vadd.f32 %v93, %v310
    %v335 = vadd.f32 %v94, %v315
    %v336 = vadd.f32 %v95, %v318
    %337 = vst [vmem:[#allocation2] sm:$0xff] %v321
    %338 = vst [vmem:[#allocation2 + $0x8] sm:$0xff] %v322
    %339 = vst [vmem:[#allocation2 + $0x10] sm:$0xff] %v323
    %340 = vst [vmem:[#allocation2 + $0x18] sm:$0xff] %v324
    %341 = vst [vmem:[#allocation2 + $0x20] sm:$0xff] %v325
    %342 = vst [vmem:[#allocation2 + $0x28] sm:$0xff] %v326
    %343 = vst [vmem:[#allocation2 + $0x30] sm:$0xff] %v327
    %344 = vst [vmem:[#allocation2 + $0x38] sm:$0xff] %v328
    %345 = vst [vmem:[#allocation2 + $0x40] sm:$0xff] %v329
    %346 = vst [vmem:[#allocation2 + $0x48] sm:$0xff] %v330
    %347 = vst [vmem:[#allocation2 + $0x50] sm:$0xff] %v331
    %348 = vst [vmem:[#allocation2 + $0x58] sm:$0xff] %v332
    %349 = vst [vmem:[#allocation2 + $0x60] sm:$0xff] %v333
    %350 = vst [vmem:[#allocation2 + $0x68] sm:$0xff] %v334
    %351 = vst [vmem:[#allocation2 + $0x70] sm:$0xff] %v335
    %352 = vst [vmem:[#allocation2 + $0x78] sm:$0xff] %v336
    // Predicated region
    $region34: #{tpu_custom_call.1} parent=1 // pred_check
      %p353 = pneg %p60
    $region35: #{tpu_custom_call.1} parent=1 // pred_check_branch
      %355 = sbr.rel (%p353) target = $region37
    $region36: #{tpu_custom_call.1} parent=1 // pred_region
      %v356 = vld [vmem:[#allocation2] sm:$0xff]
      %v357 = vld [vmem:[#allocation2 + $0x8] sm:$0xff]
      %v358 = vld [vmem:[#allocation2 + $0x10] sm:$0xff]
      %v359 = vld [vmem:[#allocation2 + $0x18] sm:$0xff]
      %v360 = vld [vmem:[#allocation2 + $0x20] sm:$0xff]
      %v361 = vld [vmem:[#allocation2 + $0x28] sm:$0xff]
      %v362 = vld [vmem:[#allocation2 + $0x30] sm:$0xff]
      %v363 = vld [vmem:[#allocation2 + $0x38] sm:$0xff]
      %v364 = vld [vmem:[#allocation2 + $0x40] sm:$0xff]
      %v365 = vld [vmem:[#allocation2 + $0x48] sm:$0xff]
      %v366 = vld [vmem:[#allocation2 + $0x50] sm:$0xff]
      %v367 = vld [vmem:[#allocation2 + $0x58] sm:$0xff]
      %v368 = vld [vmem:[#allocation2 + $0x60] sm:$0xff]
      %v369 = vld [vmem:[#allocation2 + $0x68] sm:$0xff]
      %v370 = vld [vmem:[#allocation2 + $0x70] sm:$0xff]
      %v371 = vld [vmem:[#allocation2 + $0x78] sm:$0xff]
      %v372 = vld [vmem:[%s2] sm:$0x1]
      %v374 = vlaneseq
      %v375 = vshrl.u32 %v374, 7
      %v376 = vsub.s32 0, %v375
      %v377 = vrot.slane %v372, %v376
      %v379 = vadd.f32 %v356, %v377
      %v380 = vadd.f32 %v357, %v377
      %v381 = vadd.f32 %v358, %v377
      %v382 = vadd.f32 %v359, %v377
      %v383 = vadd.f32 %v360, %v377
      %v384 = vadd.f32 %v361, %v377
      %v385 = vadd.f32 %v362, %v377
      %v386 = vadd.f32 %v363, %v377
      %v387 = vadd.f32 %v364, %v377
      %v388 = vadd.f32 %v365, %v377
      %v389 = vadd.f32 %v366, %v377
      %v390 = vadd.f32 %v367, %v377
      %v391 = vadd.f32 %v368, %v377
      %v392 = vadd.f32 %v369, %v377
      %v393 = vadd.f32 %v370, %v377
      %v394 = vadd.f32 %v371, %v377
      %v395 = vmax.f32 %v379, 0.0
      %v396 = vmax.f32 %v380, 0.0
      %v397 = vmax.f32 %v381, 0.0
      %v398 = vmax.f32 %v382, 0.0
      %v399 = vmax.f32 %v383, 0.0
      %v400 = vmax.f32 %v384, 0.0
      %v401 = vmax.f32 %v385, 0.0
      %v402 = vmax.f32 %v386, 0.0
      %v403 = vmax.f32 %v387, 0.0
      %v404 = vmax.f32 %v388, 0.0
      %v405 = vmax.f32 %v389, 0.0
      %v406 = vmax.f32 %v390, 0.0
      %v407 = vmax.f32 %v391, 0.0
      %v408 = vmax.f32 %v392, 0.0
      %v409 = vmax.f32 %v393, 0.0
      %v410 = vmax.f32 %v394, 0.0
      %v411 = vld [vmem:[#allocation8] sm:$0xff]
      %v412 = vld [vmem:[#allocation8 + $0x8] sm:$0xff]
      %v413 = vld [vmem:[#allocation8 + $0x10] sm:$0xff]
      %v414 = vld [vmem:[#allocation8 + $0x18] sm:$0xff]
      %v415 = vld [vmem:[#allocation8 + $0x20] sm:$0xff]
      %v416 = vld [vmem:[#allocation8 + $0x28] sm:$0xff]
      %v417 = vld [vmem:[#allocation8 + $0x30] sm:$0xff]
      %v418 = vld [vmem:[#allocation8 + $0x38] sm:$0xff]
      %v419 = vld [vmem:[#allocation8 + $0x40] sm:$0xff]
      %v420 = vld [vmem:[#allocation8 + $0x48] sm:$0xff]
      %v421 = vld [vmem:[#allocation8 + $0x50] sm:$0xff]
      %v422 = vld [vmem:[#allocation8 + $0x58] sm:$0xff]
      %v423 = vld [vmem:[#allocation8 + $0x60] sm:$0xff]
      %v424 = vld [vmem:[#allocation8 + $0x68] sm:$0xff]
      %v425 = vld [vmem:[#allocation8 + $0x70] sm:$0xff]
      %v426 = vld [vmem:[#allocation8 + $0x78] sm:$0xff]
      %427 = vmatprep.subr.mxu0 0.0
      %428 = vmatpush1.msra.mxu0 %v426
      %429 = vmatprep.subr.mxu0 0.0
      %430 = vmatpush1.msra.mxu0 %v425
      %431 = vmatprep.subr.mxu0 0.0
      %432 = vmatpush1.msra.mxu0 %v424
      %433 = vmatprep.subr.mxu0 0.0
      %434 = vmatpush1.msra.mxu0 %v423
      %435 = vmatprep.subr.mxu0 0.0
      %436 = vmatpush1.msra.mxu0 %v422
      %437 = vmatprep.subr.mxu0 0.0
      %438 = vmatpush1.msra.mxu0 %v421
      %439 = vmatprep.subr.mxu0 0.0
      %440 = vmatpush1.msra.mxu0 %v420
      %441 = vmatprep.subr.mxu0 0.0
      %442 = vmatpush1.msra.mxu0 %v419
      %443 = vmatprep.subr.mxu0 0.0
      %444 = vmatpush1.msra.mxu0 %v418
      %445 = vmatprep.subr.mxu0 0.0
      %446 = vmatpush1.msra.mxu0 %v417
      %447 = vmatprep.subr.mxu0 0.0
      %448 = vmatpush1.msra.mxu0 %v416
      %449 = vmatprep.subr.mxu0 0.0
      %450 = vmatpush1.msra.mxu0 %v415
      %451 = vmatprep.subr.mxu0 0.0
      %452 = vmatpush1.msra.mxu0 %v414
      %453 = vmatprep.subr.mxu0 0.0
      %454 = vmatpush1.msra.mxu0 %v413
      %455 = vmatprep.subr.mxu0 0.0
      %456 = vmatpush1.msra.mxu0 %v412
      %457 = vmatprep.subr.mxu0 0.0
      %458 = vmatpush1.msra.mxu0 %v411
      %459 = vmatprep.subr.mxu0 0.0
      %460 = vmatpush2.msra.mxu0 0.0
      %461 = vmatprep.subr.mxu0 0.0
      %462 = vmatpush2.msra.mxu0 0.0
      %463 = vmatprep.subr.mxu0 0.0
      %464 = vmatpush2.msra.mxu0 0.0
      %465 = vmatprep.subr.mxu0 0.0
      %466 = vmatpush2.msra.mxu0 0.0
      %467 = vmatprep.subr.mxu0 0.0
      %468 = vmatpush2.msra.mxu0 0.0
      %469 = vmatprep.subr.mxu0 0.0
      %470 = vmatpush2.msra.mxu0 0.0
      %471 = vmatprep.subr.mxu0 0.0
      %472 = vmatpush2.msra.mxu0 0.0
      %473 = vmatprep.subr.mxu0 0.0
      %474 = vmatpush2.msra.mxu0 0.0
      %475 = vmatprep.subr.mxu0 0.0
      %476 = vmatpush2.msra.mxu0 0.0
      %477 = vmatprep.subr.mxu0 0.0
      %478 = vmatpush2.msra.mxu0 0.0
      %479 = vmatprep.subr.mxu0 0.0
      %480 = vmatpush2.msra.mxu0 0.0
      %481 = vmatprep.subr.mxu0 0.0
      %482 = vmatpush2.msra.mxu0 0.0
      %483 = vmatprep.subr.mxu0 0.0
      %484 = vmatpush2.msra.mxu0 0.0
      %485 = vmatprep.subr.mxu0 0.0
      %486 = vmatpush2.msra.mxu0 0.0
      %487 = vmatprep.subr.mxu0 0.0
      %488 = vmatpush2.msra.mxu0 0.0
      %489 = vmatprep.subr.mxu0 0.0
      %490 = vmatpush2.msra.mxu0 0.0
      %491 = vmatprep.mubr.f32.mxu0 0.0
      %492 = vmatmul.mubr.f32.gmra.mxu0 %v395
      %v493 = vpop.f32.mrf.mxu0
      %v494 = vadd.f32 0.0, %v493
      %v495 = vpop.f32.mrf.mxu0
      %496 = vmatprep.mubr.f32.mxu0 0.0
      %497 = vmatmul.mubr.f32.gmra.mxu0 %v396
      %v498 = vpop.f32.mrf.mxu0
      %v499 = vadd.f32 0.0, %v498
      %v500 = vpop.f32.mrf.mxu0
      %501 = vmatprep.mubr.f32.mxu0 0.0
      %502 = vmatmul.mubr.f32.gmra.mxu0 %v397
      %v503 = vpop.f32.mrf.mxu0
      %v504 = vadd.f32 0.0, %v503
      %v505 = vpop.f32.mrf.mxu0
      %506 = vmatprep.mubr.f32.mxu0 0.0
      %507 = vmatmul.mubr.f32.gmra.mxu0 %v398
      %v508 = vpop.f32.mrf.mxu0
      %v509 = vadd.f32 0.0, %v508
      %v510 = vpop.f32.mrf.mxu0
      %511 = vmatprep.mubr.f32.mxu0 0.0
      %512 = vmatmul.mubr.f32.gmra.mxu0 %v399
      %v513 = vpop.f32.mrf.mxu0
      %v514 = vadd.f32 0.0, %v513
      %v515 = vpop.f32.mrf.mxu0
      %516 = vmatprep.mubr.f32.mxu0 0.0
      %517 = vmatmul.mubr.f32.gmra.mxu0 %v400
      %v518 = vpop.f32.mrf.mxu0
      %v519 = vadd.f32 0.0, %v518
      %v520 = vpop.f32.mrf.mxu0
      %521 = vmatprep.mubr.f32.mxu0 0.0
      %522 = vmatmul.mubr.f32.gmra.mxu0 %v401
      %v523 = vpop.f32.mrf.mxu0
      %v524 = vadd.f32 0.0, %v523
      %v525 = vpop.f32.mrf.mxu0
      %526 = vmatprep.mubr.f32.mxu0 0.0
      %527 = vmatmul.mubr.f32.gmra.mxu0 %v402
      %v528 = vpop.f32.mrf.mxu0
      %v529 = vadd.f32 0.0, %v528
      %v530 = vpop.f32.mrf.mxu0
      %531 = vmatprep.mubr.f32.mxu0 0.0
      %532 = vmatmul.mubr.f32.gmra.mxu0 %v403
      %v533 = vpop.f32.mrf.mxu0
      %v534 = vadd.f32 0.0, %v533
      %v535 = vpop.f32.mrf.mxu0
      %536 = vmatprep.mubr.f32.mxu0 0.0
      %537 = vmatmul.mubr.f32.gmra.mxu0 %v404
      %v538 = vpop.f32.mrf.mxu0
      %v539 = vadd.f32 0.0, %v538
      %v540 = vpop.f32.mrf.mxu0
      %541 = vmatprep.mubr.f32.mxu0 0.0
      %542 = vmatmul.mubr.f32.gmra.mxu0 %v405
      %v543 = vpop.f32.mrf.mxu0
      %v544 = vadd.f32 0.0, %v543
      %v545 = vpop.f32.mrf.mxu0
      %546 = vmatprep.mubr.f32.mxu0 0.0
      %547 = vmatmul.mubr.f32.gmra.mxu0 %v406
      %v548 = vpop.f32.mrf.mxu0
      %v549 = vadd.f32 0.0, %v548
      %v550 = vpop.f32.mrf.mxu0
      %551 = vmatprep.mubr.f32.mxu0 0.0
      %552 = vmatmul.mubr.f32.gmra.mxu0 %v407
      %v553 = vpop.f32.mrf.mxu0
      %v554 = vadd.f32 0.0, %v553
      %v555 = vpop.f32.mrf.mxu0
      %556 = vmatprep.mubr.f32.mxu0 0.0
      %557 = vmatmul.mubr.f32.gmra.mxu0 %v408
      %v558 = vpop.f32.mrf.mxu0
      %v559 = vadd.f32 0.0, %v558
      %v560 = vpop.f32.mrf.mxu0
      %561 = vmatprep.mubr.f32.mxu0 0.0
      %562 = vmatmul.mubr.f32.gmra.mxu0 %v409
      %v563 = vpop.f32.mrf.mxu0
      %v564 = vadd.f32 0.0, %v563
      %v565 = vpop.f32.mrf.mxu0
      %566 = vmatprep.mubr.f32.mxu0 0.0
      %567 = vmatmul.mubr.f32.gmra.mxu0 %v410
      %v568 = vpop.f32.mrf.mxu0
      %v569 = vadd.f32 0.0, %v568
      %v570 = vpop.f32.mrf.mxu0
      %571 = vdwg.mxu0
      %v572 = vpack.c.bf16 %v499, %v494
      %v573 = vpack.c.bf16 %v509, %v504
      %v574 = vpack.c.bf16 %v519, %v514
      %v575 = vpack.c.bf16 %v529, %v524
      %v576 = vpack.c.bf16 %v539, %v534
      %v577 = vpack.c.bf16 %v549, %v544
      %v578 = vpack.c.bf16 %v559, %v554
      %v579 = vpack.c.bf16 %v569, %v564
      %v588 = vunpack.c.l.b16 %v572
      %v589 = vunpack.c.h.b16 %v572
      %v590 = vunpack.c.l.b16 %v573
      %v591 = vunpack.c.h.b16 %v573
      %v592 = vunpack.c.l.b16 %v574
      %v593 = vunpack.c.h.b16 %v574
      %v594 = vunpack.c.l.b16 %v575
      %v595 = vunpack.c.h.b16 %v575
      %v596 = vunpack.c.l.b16 %v576
      %v597 = vunpack.c.h.b16 %v576
      %v598 = vunpack.c.l.b16 %v577
      %v599 = vunpack.c.h.b16 %v577
      %v600 = vunpack.c.l.b16 %v578
      %v601 = vunpack.c.h.b16 %v578
      %v602 = vunpack.c.l.b16 %v579
      %v603 = vunpack.c.h.b16 %v579
      %v604 = vpack.c.b16 %v588, %v588
      %v605 = vpack.c.b16 %v589, %v589
      %v606 = vpack.c.b16 %v590, %v590
      %v607 = vpack.c.b16 %v591, %v591
      %v608 = vpack.c.b16 %v592, %v592
      %v609 = vpack.c.b16 %v593, %v593
      %v610 = vpack.c.b16 %v594, %v594
      %v611 = vpack.c.b16 %v595, %v595
      %v612 = vpack.c.b16 %v596, %v596
      %v613 = vpack.c.b16 %v597, %v597
      %v614 = vpack.c.b16 %v598, %v598
      %v615 = vpack.c.b16 %v599, %v599
      %v616 = vpack.c.b16 %v600, %v600
      %v617 = vpack.c.b16 %v601, %v601
      %v618 = vpack.c.b16 %v602, %v602
      %v619 = vpack.c.b16 %v603, %v603
      %636 = vst [vmem:[#allocation9] sm:$0xf] %v604
      %637 = vst [vmem:[#allocation9 + $0x4] sm:$0xf] %v605
      %638 = vst [vmem:[#allocation9 + $0x8] sm:$0xf] %v606
      %639 = vst [vmem:[#allocation9 + $0xc] sm:$0xf] %v607
      %640 = vst [vmem:[#allocation9 + $0x10] sm:$0xf] %v608
      %641 = vst [vmem:[#allocation9 + $0x14] sm:$0xf] %v609
      %642 = vst [vmem:[#allocation9 + $0x18] sm:$0xf] %v610
      %643 = vst [vmem:[#allocation9 + $0x1c] sm:$0xf] %v611
      %644 = vst [vmem:[#allocation9 + $0x20] sm:$0xf] %v612
      %645 = vst [vmem:[#allocation9 + $0x24] sm:$0xf] %v613
      %646 = vst [vmem:[#allocation9 + $0x28] sm:$0xf] %v614
      %647 = vst [vmem:[#allocation9 + $0x2c] sm:$0xf] %v615
      %648 = vst [vmem:[#allocation9 + $0x30] sm:$0xf] %v616
      %649 = vst [vmem:[#allocation9 + $0x34] sm:$0xf] %v617
      %650 = vst [vmem:[#allocation9 + $0x38] sm:$0xf] %v618
      %651 = vst [vmem:[#allocation9 + $0x3c] sm:$0xf] %v619
    $region37: #{tpu_custom_call.1} parent=1 // pred_fallthru
      _
    // Predicated region
    $region38: #{tpu_custom_call.1} parent=1 // pred_check
      _
    $region39: #{tpu_custom_call.1} parent=1 // pred_check_branch
      %653 = sbr.rel (0) target = $region41
    $region40: #{tpu_custom_call.1} parent=1 // pred_region
      %s655 = ssub.s32 1024, 1024
      %656 = vsyncadd [#allocation5], %s655
      %s657 = sshll.u32 [#allocation9], 4
      %s658 = int_to_ptr.vmem [resolvable:$true] %s657
      %663 = dma.vmem_to_hbm [thread:$0]  %s658, 1024, %s4, [#allocation5], 64, 64, 4
    $region41: #{tpu_custom_call.1} parent=1 // pred_fallthru
      _
    // Predicated region
    $region42: #{tpu_custom_call.1} parent=1 // pred_check
      _
    $region43: #{tpu_custom_call.1} parent=1 // pred_check_branch
      %665 = sbr.rel (0) target = $region45
    $region44: #{tpu_custom_call.1} parent=1 // pred_region
      %666 = dma.done [#allocation5], 1024
    $region45: #{tpu_custom_call.1} parent=1 // pred_fallthru
      _
    %667 = vsyncpa [#allocation4], 1
    %668 = vsyncpa [#allocation7], 1
    %669 = vsyncpa [#allocation5], 1

</llo_original>
